<compile_context>
chip_gen: v5e
topology: v5e:2x2
jax: 0.10.0
libtpu: 0.0.40
codegen_flags: <defaults>
</compile_context>

<pallas_src>
import functools
import math

import jax
import jax.numpy as jnp
import numpy as np
from jax import lax
from jax.experimental import pallas as pl
from jax.experimental.pallas import tpu as pltpu

EPS = 1e-5


# ----------------------------------------------------------------------------
# One-time (import-time, eager) probe of pltpu.roll's sign convention so the
# main kernel can hardcode it with zero runtime cost and zero risk.
# ----------------------------------------------------------------------------
def _detect_roll_right_is_pos() -> bool:
    """True iff pltpu.roll(x, +s, axis) behaves like jnp.roll: y[l] = x[l - s]."""
    def probe(x_ref, o_ref):
        o_ref[...] = pltpu.roll(x_ref[...], shift=1, axis=1)

    x = jnp.arange(8 * 128, dtype=jnp.float32).reshape(8, 128)
    y = pl.pallas_call(
        probe, out_shape=jax.ShapeDtypeStruct((8, 128), jnp.float32))(x)
    # jnp.roll-like convention: y[0, 1] == x[0, 0] == 0.
    return bool(np.asarray(y)[0, 1] == 0.0)


_ROLL_RIGHT_IS_POS = _detect_roll_right_is_pos()


# ----------------------------------------------------------------------------
# Fused kernel: one grid step = one (R, H*W) tile, R = n_blk * C packed rows.
# ----------------------------------------------------------------------------
def _resnet_block_kernel(x_ref, w1_ref, w2_ref, o_ref, *, H, W,
                         roll_right_is_pos, use_bf16):
    R, HW = x_ref.shape
    f32 = jnp.float32
    x = x_ref[...].astype(f32)

    # Lane-only boundary masks, built once at (1, HW) and broadcast in selects.
    lane = lax.broadcasted_iota(jnp.int32, (1, HW), 1)
    col = (lane & (W - 1)) if (W & (W - 1)) == 0 else (lane % W)
    row0_m = lane < W                    # output row 0
    rowlast_m = lane >= (H - 1) * W      # output row H-1
    col0_m = col == 0                    # output col 0
    collast_m = col == W - 1             # output col W-1

    def shift(v, s):
        # y[l] = v[(l - s) % HW]  (data moved toward higher lane index by s).
        amt = (s if roll_right_is_pos else -s) % HW
        return pltpu.roll(v, shift=amt, axis=1)

    def conv3x3_instnorm(v, w_ref):
        """3x3 conv (reflect pad 1, no bias) + InstanceNorm on a (R, HW) tile."""
        acc = jnp.zeros((R, HW), f32)
        for kh in range(3):
            # Row-shifted image with reflect boundary: reflect(-1)=1, reflect(H)=H-2.
            if kh == 0:                                   # needs row i-1
                base = jnp.where(row0_m, shift(v, -W), shift(v, W))
            elif kh == 1:                                 # row i
                base = v
            else:                                         # needs row i+1
                base = jnp.where(rowlast_m, shift(v, W), shift(v, -W))
            if use_bf16:
                base = base.astype(jnp.bfloat16)          # one cast per row variant
            c_r = shift(base, 1)                          # col j-1
            c_l = shift(base, -1)                         # col j+1
            cols = (jnp.where(col0_m, c_l, c_r),          # kw = 0 (reflect at col 0)
                    base,                                 # kw = 1
                    jnp.where(collast_m, c_r, c_l))       # kw = 2 (reflect at col W-1)
            # Three consecutive MXU matmuls (per-tap weight loads; f32 accumulate).
            for kw in range(3):
                acc = acc + jnp.dot(w_ref[kh * 3 + kw], cols[kw],
                                    preferred_element_type=f32)
        # InstanceNorm2d(affine=False): fused single-pass stats per row.
        s1 = jnp.sum(acc, axis=1, keepdims=True)
        s2 = jnp.sum(acc * acc, axis=1, keepdims=True)
        mean = s1 * (1.0 / HW)
        var = s2 * (1.0 / HW) - mean * mean
        return (acc - mean) * lax.rsqrt(var + EPS)

    y = jnp.maximum(conv3x3_instnorm(x, w1_ref), 0.0)     # conv1 + IN + ReLU
    y = conv3x3_instnorm(y, w2_ref)                       # conv2 + IN
    o_ref[...] = (x + y).astype(o_ref.dtype)              # skip connection


# ----------------------------------------------------------------------------
# Wrapper
# ----------------------------------------------------------------------------
def resnet_block_forward(x_nchw, w1, b1, w2, b2, *, use_bf16_mxu=False):
    """x_nchw: (N, C, H, W); w1/w2: (Cout, Cin, 3, 3) PyTorch layout; b1/b2: (C,).

    b1/b2 are accepted for API parity but never read: a per-channel conv bias is
    exactly removed by the affine-free InstanceNorm that follows each conv.
    (Only valid for norm_layer=InstanceNorm2d(affine=False).)
    """
    del b1, b2
    N, C, H, W = x_nchw.shape
    HW = H * W

    # Pack a few samples along the sublane axis when C is tiny so the tile is at
    # least one full (8, 128)-vreg tall and per-grid-step overhead amortizes.
    n_blk = 1
    if C < 8:
        n_blk = math.gcd(N, max(1, 8 // C))
    R = n_blk * C
    G = N // n_blk

    x_flat = x_nchw.reshape(G, R, HW)     # free reshape (groups n_blk samples)

    def to_taps(w):                       # (Cout, Cin, 3, 3) -> (9, R, R)
        t = jnp.transpose(w, (2, 3, 0, 1)).reshape(9, C, C)
        if n_blk > 1:
            eye = jnp.eye(n_blk, dtype=t.dtype)
            t = jnp.einsum("ij,tab->tiajb", eye, t).reshape(9, R, R)  # block-diag
        if use_bf16_mxu:
            t = t.astype(jnp.bfloat16)    # pre-cast taps once in the wrapper
        return t

    kernel = functools.partial(
        _resnet_block_kernel, H=H, W=W,
        roll_right_is_pos=_ROLL_RIGHT_IS_POS, use_bf16=use_bf16_mxu)

    # Explicit scoped-VMEM budget: scale with the per-step tile, keep a floor of
    # 32 MiB and cap at 64 MiB (safe on v5e/v6e/v7x for the sizes handled here).
    sample_bytes = R * HW * 4
    vmem_limit = int(min(64 * 1024 * 1024, max(32 * 1024 * 1024, 16 * sample_bytes)))

    out_flat = pl.pallas_call(
        kernel,
        out_shape=jax.ShapeDtypeStruct((G, R, HW), x_nchw.dtype),
        grid=(G,),
        in_specs=[
            pl.BlockSpec((None, R, HW), lambda g: (g, 0, 0)),   # one tile / step
            pl.BlockSpec((9, R, R), lambda g: (0, 0, 0)),       # conv1 taps
            pl.BlockSpec((9, R, R), lambda g: (0, 0, 0)),       # conv2 taps
        ],
        out_specs=pl.BlockSpec((None, R, HW), lambda g: (g, 0, 0)),
        compiler_params=pltpu.CompilerParams(
            dimension_semantics=("parallel",),
            vmem_limit_bytes=vmem_limit),
    )(x_flat, to_taps(w1), to_taps(w2))

    return out_flat.reshape(N, C, H, W)


# ---------------- pure-JAX reference (mirrors the PyTorch forward) -------------
def resnet_block_reference(x, w1, b1, w2, b2):
    def conv_in(v, w, b):
        vp = jnp.pad(v, ((0, 0), (0, 0), (1, 1), (1, 1)), mode="reflect")
        y = lax.conv_general_dilated(
            vp, w, window_strides=(1, 1), padding="VALID",
            dimension_numbers=("NCHW", "OIHW", "NCHW"))
        y = y + b.reshape(1, -1, 1, 1)
        mean = jnp.mean(y, axis=(2, 3), keepdims=True)
        var = jnp.mean((y - mean) ** 2, axis=(2, 3), keepdims=True)
        return (y - mean) * lax.rsqrt(var + EPS)

    y = jnp.maximum(conv_in(x, w1, b1), 0.0)
    y = conv_in(y, w2, b2)
    return x + y


if __name__ == "__main__":
    N, C, H, W = 2, 4, 16, 16   # dim = 4
    key = jax.random.PRNGKey(0)
    kx, kw1, kb1, kw2, kb2 = jax.random.split(key, 5)

    x = jax.random.normal(kx, (N, C, H, W), jnp.float32)
    # Conv weights in PyTorch layout (Cout, Cin, kh, kw); biases (Cout,).
    w1 = 0.2 * jax.random.normal(kw1, (C, C, 3, 3), jnp.float32)
    b1 = 0.1 * jax.random.normal(kb1, (C,), jnp.float32)
    w2 = 0.2 * jax.random.normal(kw2, (C, C, 3, 3), jnp.float32)
    b2 = 0.1 * jax.random.normal(kb2, (C,), jnp.float32)

    out = jax.jit(resnet_block_forward)(x, w1, b1, w2, b2)
    jax.block_until_ready(out)

    ref = resnet_block_reference(x, w1, b1, w2, b2)
    np.testing.assert_allclose(np.asarray(out), np.asarray(ref),
                               rtol=1e-4, atol=1e-4)
    assert out.shape == (N, C, H, W)
    print("KERNEL_OK")
</pallas_src>

<mosaic_0001>
module attributes {stable_mosaic.version = 11 : i64} {
  func.func @probe(%arg0: memref<8x128xf32, #tpu.memory_space<vmem>>, %arg1: memref<8x128xf32, #tpu.memory_space<vmem>>) attributes {dimension_semantics = [], scalar_prefetch = 0 : i64, scratch_operands = 0 : i64, tpu.core_type = #tpu.core_type<tc>} {
    %c0 = arith.constant 0 : index
    %c0_0 = arith.constant 0 : index
    %0 = vector.load %arg0[%c0, %c0_0] : memref<8x128xf32, #tpu.memory_space<vmem>>, vector<8x128xf32>
    %c1_i32 = arith.constant 1 : i32
    %1 = tpu.dynamic_rotate %0 by %c1_i32 dim 1 : vector<8x128xf32>, i32 -> vector<8x128xf32>
    %c0_1 = arith.constant 0 : index
    %c0_2 = arith.constant 0 : index
    %2 = vector.load %arg1[%c0_1, %c0_2] : memref<8x128xf32, #tpu.memory_space<vmem>>, vector<8x128xf32>
    tpu.vector_store %arg1[%c0_1, %c0_2], %1 {strides = array<i32>} : memref<8x128xf32, #tpu.memory_space<vmem>>, vector<8x128xf32>,
    return
  }
}

</mosaic_0001>

<llo_original>
// kernel: tpu_custom_call.1
$region0: #{tpu_custom_call.1}
  #allocation0 [shape = 'u32[]', space=smem, size = 0x4, offset = 0x4, fixed_abs, tag = 'smem constant byte address 0x4 - core index']
  #allocation1 [shape = 'u32[72,128]{1,0:T(1,128)}', space=vmem, size = 0x9000, scoped, tag = 'internal scratch']
  %s0 = inlined_call_operand.hbm [shape: f32[8,128], index: 0, kind: input, shape index: {}]
  %s1 = inlined_call_operand.hbm [shape: f32[8,128], index: 1, kind: output, shape index: {}]
  %s2 = sld [smem:[#allocation0]]
  $region18: #{tpu_custom_call.1} parent=0
    _
  %s4 = ssub.s32 1, %s2
  %s5 = scalar_select 0, %s4, %s2
  $region1: #{tpu_custom_call.1} parent=0
    #allocation2 [shape = 'u8[4096]{0}', space=vmem, size = 0x1000, scoped, tag = 'input window, operand 0, single buffered']
    #allocation3 [shape = 's32[1]{0}', space=sflag, size = 0x4, scoped, tag = 'scoped memory for tpu_custom_call.1']
    #allocation4 [shape = 's32[1]{0}', space=sflag, size = 0x4, scoped, tag = 'scoped memory for tpu_custom_call.1']
    #allocation5 [shape = 'u8[4096]{0}', space=vmem, size = 0x1000, scoped, tag = 'output window, operand 0, single buffered']
    %6 = vsyncpa [#allocation3], 0
    %7 = vsyncpa [#allocation4], 0
    // Predicated region
    $region2: #{tpu_custom_call.1} parent=1 // pred_check
      _
    $region3: #{tpu_custom_call.1} parent=1 // pred_check_branch
      %9 = sbr.rel (0) target = $region5
    $region4: #{tpu_custom_call.1} parent=1 // pred_region
      %11 = vsyncadd [#allocation3], 0
      %s13 = sshll.u32 %s0, 4
      %s14 = int_to_ptr.hbm [resolvable:$true] %s13
      %s15 = sshll.u32 [#allocation2], 4
      %s16 = int_to_ptr.vmem [resolvable:$true] %s15
      %18 = dma.hbm_to_vmem [thread:$0]  %s14, 128, %s16, [#allocation3]
    $region5: #{tpu_custom_call.1} parent=1 // pred_fallthru
      _
    // Predicated region
    $region6: #{tpu_custom_call.1} parent=1 // pred_check
      _
    $region7: #{tpu_custom_call.1} parent=1 // pred_check_branch
      %20 = sbr.rel (0) target = $region9
    $region8: #{tpu_custom_call.1} parent=1 // pred_region
      %22 = dma.done [#allocation3], 128
    $region9: #{tpu_custom_call.1} parent=1 // pred_fallthru
      _
    %v23 = vld [vmem:[#allocation2] sm:$0xff]
    %24 = vrot.lane.b32.xlu0 %v23, 1
    %v25 = vpop.permute.xlu0 %24
    %26 = vst [vmem:[#allocation5] sm:$0xff] %v25
    // Predicated region
    $region10: #{tpu_custom_call.1} parent=1 // pred_check
      _
    $region11: #{tpu_custom_call.1} parent=1 // pred_check_branch
      %28 = sbr.rel (0) target = $region13
    $region12: #{tpu_custom_call.1} parent=1 // pred_region
      %30 = vsyncadd [#allocation4], 0
      %s32 = sshll.u32 [#allocation5], 4
      %s33 = int_to_ptr.vmem [resolvable:$true] %s32
      %s34 = sshll.u32 %s1, 4
      %s35 = int_to_ptr.hbm [resolvable:$true] %s34
      %37 = dma.vmem_to_hbm [thread:$0]  %s33, 128, %s35, [#allocation4]
    $region13: #{tpu_custom_call.1} parent=1 // pred_fallthru
      _
    // Predicated region
    $region14: #{tpu_custom_call.1} parent=1 // pred_check
      _
    $region15: #{tpu_custom_call.1} parent=1 // pred_check_branch
      %39 = sbr.rel (0) target = $region17
    $region16: #{tpu_custom_call.1} parent=1 // pred_region
      %41 = dma.done [#allocation4], 128
    $region17: #{tpu_custom_call.1} parent=1 // pred_fallthru
      _
    %42 = vsyncpa [#allocation3], 1
    %43 = vsyncpa [#allocation4], 1

</llo_original>
